<compile_context>
chip_gen: v7x
topology: tpu7x:2x2x1
jax: 0.10.0
libtpu: 0.0.40
codegen_flags: <defaults>
</compile_context>

<pallas_src>
import functools

import jax
import jax.numpy as jnp
from jax.experimental import pallas as pl
from jax.experimental.pallas import tpu as pltpu


def _round_up(n: int, m: int) -> int:
    return ((n + m - 1) // m) * m


def _sublayer_connection_kernel(x_ref, w_ref, b_ref, o_ref, *, eps: float):
    # x_ref: (TM, D) input rows
    # w_ref: (D, D)  folded weight  (a_2 pre-multiplied, pre-cast in wrapper)
    # b_ref: (1, D)  folded bias    (b_2 @ W + wb), f32
    x = x_ref[...].astype(jnp.float32)
    d = x.shape[-1]

    # --- LayerNorm: two-pass statistics (matches torch: unbiased std) ---
    mean = jnp.sum(x, axis=-1, keepdims=True) * (1.0 / d)
    xc = x - mean
    var = jnp.sum(xc * xc, axis=-1, keepdims=True) * (1.0 / max(d - 1, 1))
    # Module divides by (std + eps); exact reciprocal of a (TM, 1) column is
    # essentially free, then the per-element divide becomes a multiply.
    inv = 1.0 / (jnp.sqrt(var) + eps)
    xn = xc * inv                       # a_2 / b_2 folded into W' / b'

    # --- sublayer: dense D -> D on the MXU, f32 accumulation ---
    # Operands arrive pre-cast from the wrapper; only the activation is cast
    # here (no-op on the f32 path).
    s = jnp.dot(xn.astype(w_ref.dtype), w_ref[...],
                preferred_element_type=jnp.float32) + b_ref[...]

    # --- dropout (eval mode => identity) + residual ---
    # TODO(synk): training-mode dropout (Bernoulli mask + 1/(1-p) scale) omitted.
    o_ref[...] = (x + s).astype(o_ref.dtype)


def sublayer_connection(x, a2, b2, w, wb, *, eps=1e-6, tile_rows=256,
                        matmul_dtype="auto"):
    """x: [B, S, D].  Returns x + Dense(LayerNorm(x))  (eval-mode dropout).

    tile_rows:    requested row-tile size (clamped / 8-aligned for small inputs).
    matmul_dtype: "auto" -> bf16 MXU operands when D >= 512 (v6e/v7x fast path,
                  f32 accumulation), f32 otherwise; or pass a dtype / None.
    """
    B, S, D = x.shape
    rows = B * S
    x2d = x.reshape(rows, D)

    if matmul_dtype == "auto":
        matmul_dtype = jnp.bfloat16 if D >= 512 else None

    # Fold the LayerNorm affine and dense bias into the weight ONCE, offline:
    #   (a2 * xn + b2) @ W + wb  ==  xn @ (a2[:, None] * W) + (b2 @ W + wb)
    w32 = w.astype(jnp.float32)
    w_f = a2.astype(jnp.float32)[:, None] * w32
    b_f = (jnp.dot(b2.astype(jnp.float32), w32,
                   precision=jax.lax.Precision.HIGHEST)
           + wb.astype(jnp.float32)).reshape(1, D)
    if matmul_dtype is not None:
        w_f = w_f.astype(matmul_dtype)      # pre-cast once; never cast W in-kernel

    # Row tile: multiple of 8 sublanes; default 256 (one MXU pass on v6e/v7x)
    # when the row count allows.  Lane dim D is kept whole (full array dim);
    # production D should be a multiple of 128 for lane-dense stores.
    tm = _round_up(max(1, min(int(tile_rows), rows)), 8)
    grid = pl.cdiv(rows, tm)                # partial last block -> masked stores

    # VMEM budget: double-buffered x/out tiles, the (possibly single-buffered)
    # resident weight, folded bias, plus live in-kernel f32 temporaries.
    x_item = jnp.dtype(x2d.dtype).itemsize
    w_item = jnp.dtype(w_f.dtype).itemsize
    vmem_needed = (2 * 2 * tm * D * x_item      # x in + out, double-buffered
                   + 2 * D * D * w_item         # W' (<= 2 bufs; 1 when Buffered(1))
                   + 2 * D * 4                  # folded bias
                   + 6 * tm * D * 4             # in-kernel f32 temporaries
                   + (2 << 20))                 # headroom / internal scratch
    try:
        cap = int(pltpu.get_tpu_info().vmem_capacity_bytes)
    except Exception:                           # interpret / non-TPU fallback
        cap = 64 << 20                          # assume v7x's 64 MiB per-TC VMEM
    vmem_limit = int(min(max(vmem_needed, 16 << 20), (cap * 3) // 4))

    # TODO(synk): for very large D (f32 D>=2048-ish, or any D where W' exceeds
    # ~half of per-core VMEM) tile the output columns with a (D, tn) weight
    # block (tn a multiple of 256) and slice the residual/bias per column tile.

    kernel = functools.partial(_sublayer_connection_kernel, eps=float(eps))

    def run(single_buffer_consts: bool):
        # Grid-invariant operands: constant index_map already skips re-DMA;
        # Buffered(1) also drops the second (useless) buffer -> halves W VMEM.
        pm = {"pipeline_mode": pl.Buffered(1)} if single_buffer_consts else {}
        in_specs = [
            pl.BlockSpec((tm, D), lambda i: (i, 0)),        # x rows (pipelined)
            pl.BlockSpec((D, D), lambda i: (0, 0), **pm),   # folded W (resident)
            pl.BlockSpec((1, D), lambda i: (0, 0), **pm),   # folded bias
        ]
        return pl.pallas_call(
            kernel,
            out_shape=jax.ShapeDtypeStruct((rows, D), x.dtype),
            grid_spec=pltpu.PrefetchScalarGridSpec(
                num_scalar_prefetch=0,
                grid=(grid,),
                in_specs=in_specs,
                out_specs=pl.BlockSpec((tm, D), lambda i: (i, 0)),
            ),
            compiler_params=pltpu.CompilerParams(
                dimension_semantics=("parallel",),   # rows shard across TCs (v7x)
                vmem_limit_bytes=vmem_limit,
            ),
        )(x2d, w_f, b_f)

    try:
        out = run(True)
    except Exception:
        # pipeline_mode / Buffered(1) unsupported in this jax version: retry
        # with plain (double-buffered) constant specs.
        out = run(False)

    return out.reshape(B, S, D)


def _reference(x, a2, b2, w, wb, eps=1e-6):
    mean = jnp.mean(x, axis=-1, keepdims=True)
    xc = x - mean
    var = jnp.sum(xc * xc, axis=-1, keepdims=True) / (x.shape[-1] - 1)
    std = jnp.sqrt(var)
    y = a2 * xc / (std + eps) + b2
    # HIGHEST precision so the reference is a true-f32 matmul (the default TPU
    # einsum precision is lower than the kernel's f32 MXU path).
    s = jnp.einsum("bsd,de->bse", y, w,
                   precision=jax.lax.Precision.HIGHEST) + wb
    return x + s


if __name__ == "__main__":
    key = jax.random.PRNGKey(0)
    B, S, D = 2, 8, 32

    kx, kw, ka, kb, kc = jax.random.split(key, 5)
    x = jax.random.normal(kx, (B, S, D), dtype=jnp.float32)

    # Parameters (module init is ones/zeros; perturb slightly so the affine
    # folding path is actually exercised).
    a2 = 1.0 + 0.1 * jax.random.normal(ka, (D,), dtype=jnp.float32)   # LayerNorm.a_2
    b2 = 0.1 * jax.random.normal(kb, (D,), dtype=jnp.float32)         # LayerNorm.b_2
    w = jax.random.normal(kw, (D, D), dtype=jnp.float32) * 0.05       # sublayer dense
    wb = 0.01 * jax.random.normal(kc, (D,), dtype=jnp.float32)        # dense bias

    out = sublayer_connection(x, a2, b2, w, wb)
    jax.block_until_ready(out)

    ref = _reference(x, a2, b2, w, wb)
    assert out.shape == ref.shape
    max_err = jnp.max(jnp.abs(out - ref))
    assert jnp.allclose(out, ref, atol=5e-4, rtol=5e-4), (
        f"mismatch vs reference, max|err|={max_err}")

    print("KERNEL_OK")
</pallas_src>

<mosaic_0001>
module attributes {stable_mosaic.version = 11 : i64} {
  func.func @_sublayer_connection_kernel(%arg0: i32, %arg1: memref<16x32xf32, #tpu.memory_space<vmem>>, %arg2: memref<32x32xf32, #tpu.memory_space<vmem>>, %arg3: memref<1x32xf32, #tpu.memory_space<vmem>>, %arg4: memref<16x32xf32, #tpu.memory_space<vmem>>) attributes {dimension_semantics = [#tpu.dimension_semantics<parallel>], iteration_bounds = array<i64: 1>, scalar_prefetch = 0 : i64, scratch_operands = 0 : i64, tpu.core_type = #tpu.core_type<tc>, window_params = [{transform_indices = @transform_0, window_bounds = array<i64: 16, 32>}, {pipeline_mode = #tpu.pipeline_mode<synchronous>, transform_indices = @transform_1, window_bounds = array<i64: 32, 32>}, {pipeline_mode = #tpu.pipeline_mode<synchronous>, transform_indices = @transform_2, window_bounds = array<i64: 1, 32>}, {transform_indices = @transform_3, window_bounds = array<i64: 16, 32>}]} {
    %c0 = arith.constant 0 : index
    %c0_0 = arith.constant 0 : index
    %0 = vector.load %arg1[%c0, %c0_0] : memref<16x32xf32, #tpu.memory_space<vmem>>, vector<16x32xf32>
    %cst = arith.constant dense<0.000000e+00> : vector<16xf32>
    %1 = vector.multi_reduction <add>, %0, %cst [1] : vector<16x32xf32> to vector<16xf32>
    %2 = vector.shape_cast %1 : vector<16xf32> to vector<16x1xf32>
    %cst_1 = arith.constant 3.125000e-02 : f32
    %3 = vector.broadcast %cst_1 : f32 to vector<16x1xf32>
    %4 = arith.mulf %2, %3 : vector<16x1xf32>
    %5 = vector.broadcast %4 : vector<16x1xf32> to vector<16x32xf32>
    %6 = arith.subf %0, %5 : vector<16x32xf32>
    %7 = arith.mulf %6, %6 : vector<16x32xf32>
    %cst_2 = arith.constant dense<0.000000e+00> : vector<16xf32>
    %8 = vector.multi_reduction <add>, %7, %cst_2 [1] : vector<16x32xf32> to vector<16xf32>
    %9 = vector.shape_cast %8 : vector<16xf32> to vector<16x1xf32>
    %cst_3 = arith.constant 0.0322580636 : f32
    %10 = vector.broadcast %cst_3 : f32 to vector<16x1xf32>
    %11 = arith.mulf %9, %10 : vector<16x1xf32>
    %12 = math.sqrt %11 : vector<16x1xf32>
    %cst_4 = arith.constant 9.99999997E-7 : f32
    %13 = vector.broadcast %cst_4 : f32 to vector<16x1xf32>
    %14 = arith.addf %12, %13 : vector<16x1xf32>
    %cst_5 = arith.constant 1.000000e+00 : f32
    %15 = vector.broadcast %cst_5 : f32 to vector<16x1xf32>
    %16 = arith.divf %15, %14 : vector<16x1xf32>
    %17 = vector.broadcast %16 : vector<16x1xf32> to vector<16x32xf32>
    %18 = arith.mulf %6, %17 : vector<16x32xf32>
    %c0_6 = arith.constant 0 : index
    %c0_7 = arith.constant 0 : index
    %19 = vector.load %arg2[%c0_6, %c0_7] : memref<32x32xf32, #tpu.memory_space<vmem>>, vector<32x32xf32>
    %cst_8 = arith.constant dense<0.000000e+00> : vector<16x32xf32>
    %20 = tpu.matmul %18, %19, %cst_8 {dimension_numbers = #tpu.dot_dimension_numbers<[1], [0], [0], [1], [0, 0, 1, 1], [], []>} : vector<16x32xf32>, vector<32x32xf32>, vector<16x32xf32> -> vector<16x32xf32>
    %c0_9 = arith.constant 0 : index
    %c0_10 = arith.constant 0 : index
    %21 = vector.load %arg3[%c0_9, %c0_10] : memref<1x32xf32, #tpu.memory_space<vmem>>, vector<1x32xf32>
    %22 = vector.broadcast %21 : vector<1x32xf32> to vector<16x32xf32>
    %23 = arith.addf %20, %22 : vector<16x32xf32>
    %24 = arith.addf %0, %23 : vector<16x32xf32>
    %c0_11 = arith.constant 0 : index
    %c0_12 = arith.constant 0 : index
    %25 = vector.load %arg4[%c0_11, %c0_12] : memref<16x32xf32, #tpu.memory_space<vmem>>, vector<16x32xf32>
    tpu.vector_store %arg4[%c0_11, %c0_12], %24 {strides = array<i32>} : memref<16x32xf32, #tpu.memory_space<vmem>>, vector<16x32xf32>,
    return
  }
  func.func @transform_0(%arg0: i32) -> (i32, i32) {
    %c0_i32 = arith.constant 0 : i32
    %c0_i32_0 = arith.constant 0 : i32
    return %arg0, %c0_i32 : i32, i32
  }
  func.func @transform_1(%arg0: i32) -> (i32, i32) {
    %c0_i32 = arith.constant 0 : i32
    %c0_i32_0 = arith.constant 0 : i32
    %c0_i32_1 = arith.constant 0 : i32
    return %c0_i32, %c0_i32_0 : i32, i32
  }
  func.func @transform_2(%arg0: i32) -> (i32, i32) {
    %c0_i32 = arith.constant 0 : i32
    %c0_i32_0 = arith.constant 0 : i32
    %c0_i32_1 = arith.constant 0 : i32
    return %c0_i32, %c0_i32_0 : i32, i32
  }
  func.func @transform_3(%arg0: i32) -> (i32, i32) {
    %c0_i32 = arith.constant 0 : i32
    %c0_i32_0 = arith.constant 0 : i32
    return %arg0, %c0_i32 : i32, i32
  }
}

module attributes {stable_mosaic.version = 11 : i64} {
  func.func @_sublayer_connection_kernel(%arg0: i32, %arg1: memref<16x32xf32, #tpu.memory_space<vmem>>, %arg2: memref<32x32xf32, #tpu.memory_space<vmem>>, %arg3: memref<1x32xf32, #tpu.memory_space<vmem>>, %arg4: memref<16x32xf32, #tpu.memory_space<vmem>>) attributes {dimension_semantics = [#tpu.dimension_semantics<parallel>], iteration_bounds = array<i64: 1>, scalar_prefetch = 0 : i64, scratch_operands = 0 : i64, tpu.core_type = #tpu.core_type<tc>, window_params = [{transform_indices = @transform_0, window_bounds = array<i64: 16, 32>}, {pipeline_mode = #tpu.pipeline_mode<synchronous>, transform_indices = @transform_1, window_bounds = array<i64: 32, 32>}, {pipeline_mode = #tpu.pipeline_mode<synchronous>, transform_indices = @transform_2, window_bounds = array<i64: 1, 32>}, {transform_indices = @transform_3, window_bounds = array<i64: 16, 32>}]} {
    %c0 = arith.constant 0 : index
    %c0_0 = arith.constant 0 : index
    %0 = vector.load %arg1[%c0, %c0_0] : memref<16x32xf32, #tpu.memory_space<vmem>>, vector<16x32xf32>
    %cst = arith.constant dense<0.000000e+00> : vector<16xf32>
    %1 = vector.multi_reduction <add>, %0, %cst [1] : vector<16x32xf32> to vector<16xf32>
    %2 = vector.shape_cast %1 : vector<16xf32> to vector<16x1xf32>
    %cst_1 = arith.constant 3.125000e-02 : f32
    %3 = vector.broadcast %cst_1 : f32 to vector<16x1xf32>
    %4 = arith.mulf %2, %3 : vector<16x1xf32>
    %5 = vector.broadcast %4 : vector<16x1xf32> to vector<16x32xf32>
    %6 = arith.subf %0, %5 : vector<16x32xf32>
    %7 = arith.mulf %6, %6 : vector<16x32xf32>
    %cst_2 = arith.constant dense<0.000000e+00> : vector<16xf32>
    %8 = vector.multi_reduction <add>, %7, %cst_2 [1] : vector<16x32xf32> to vector<16xf32>
    %9 = vector.shape_cast %8 : vector<16xf32> to vector<16x1xf32>
    %cst_3 = arith.constant 0.0322580636 : f32
    %10 = vector.broadcast %cst_3 : f32 to vector<16x1xf32>
    %11 = arith.mulf %9, %10 : vector<16x1xf32>
    %12 = math.sqrt %11 : vector<16x1xf32>
    %cst_4 = arith.constant 9.99999997E-7 : f32
    %13 = vector.broadcast %cst_4 : f32 to vector<16x1xf32>
    %14 = arith.addf %12, %13 : vector<16x1xf32>
    %cst_5 = arith.constant 1.000000e+00 : f32
    %15 = vector.broadcast %cst_5 : f32 to vector<16x1xf32>
    %16 = arith.divf %15, %14 : vector<16x1xf32>
    %17 = vector.broadcast %16 : vector<16x1xf32> to vector<16x32xf32>
    %18 = arith.mulf %6, %17 : vector<16x32xf32>
    %c0_6 = arith.constant 0 : index
    %c0_7 = arith.constant 0 : index
    %19 = vector.load %arg2[%c0_6, %c0_7] : memref<32x32xf32, #tpu.memory_space<vmem>>, vector<32x32xf32>
    %cst_8 = arith.constant dense<0.000000e+00> : vector<16x32xf32>
    %20 = tpu.matmul %18, %19, %cst_8 {dimension_numbers = #tpu.dot_dimension_numbers<[1], [0], [0], [1], [0, 0, 1, 1], [], []>} : vector<16x32xf32>, vector<32x32xf32>, vector<16x32xf32> -> vector<16x32xf32>
    %c0_9 = arith.constant 0 : index
    %c0_10 = arith.constant 0 : index
    %21 = vector.load %arg3[%c0_9, %c0_10] : memref<1x32xf32, #tpu.memory_space<vmem>>, vector<1x32xf32>
    %22 = vector.broadcast %21 : vector<1x32xf32> to vector<16x32xf32>
    %23 = arith.addf %20, %22 : vector<16x32xf32>
    %24 = arith.addf %0, %23 : vector<16x32xf32>
    %c0_11 = arith.constant 0 : index
    %c0_12 = arith.constant 0 : index
    %25 = vector.load %arg4[%c0_11, %c0_12] : memref<16x32xf32, #tpu.memory_space<vmem>>, vector<16x32xf32>
    tpu.vector_store %arg4[%c0_11, %c0_12], %24 {strides = array<i32>} : memref<16x32xf32, #tpu.memory_space<vmem>>, vector<16x32xf32>,
    return
  }
  func.func @transform_0(%arg0: i32) -> (i32, i32) {
    %c0_i32 = arith.constant 0 : i32
    %c0_i32_0 = arith.constant 0 : i32
    return %arg0, %c0_i32 : i32, i32
  }
  func.func @transform_1(%arg0: i32) -> (i32, i32) {
    %c0_i32 = arith.constant 0 : i32
    %c0_i32_0 = arith.constant 0 : i32
    %c0_i32_1 = arith.constant 0 : i32
    return %c0_i32, %c0_i32_0 : i32, i32
  }
  func.func @transform_2(%arg0: i32) -> (i32, i32) {
    %c0_i32 = arith.constant 0 : i32
    %c0_i32_0 = arith.constant 0 : i32
    %c0_i32_1 = arith.constant 0 : i32
    return %c0_i32, %c0_i32_0 : i32, i32
  }
  func.func @transform_3(%arg0: i32) -> (i32, i32) {
    %c0_i32 = arith.constant 0 : i32
    %c0_i32_0 = arith.constant 0 : i32
    return %arg0, %c0_i32 : i32, i32
  }
}

</mosaic_0001>

<llo_original>
// kernel: tpu_custom_call.1
$region0: #{tpu_custom_call.1}
  #allocation0 [shape = 'u32[]', space=smem, size = 0x4, offset = 0x4, fixed_abs, tag = 'smem constant byte address 0x4 - core index']
  #allocation1 [shape = 'u32[144,128]{1,0:T(1,128)}', space=vmem, size = 0x12000, scoped, tag = 'internal scratch']
  %s0 = inlined_call_operand.hbm [shape: f32[16,32], index: 0, kind: input, shape index: {}]
  %s1 = inlined_call_operand.hbm [shape: f32[32,32], index: 1, kind: input, shape index: {}]
  %s2 = inlined_call_operand.vmem [shape: f32[1,32], index: 2, kind: input, shape index: {}]
  %s3 = inlined_call_operand.hbm [shape: f32[16,32], index: 3, kind: output, shape index: {}]
  %s4 = sld [smem:[#allocation0]]
  $region30: #{tpu_custom_call.1} parent=0
    _
  %s6 = ssub.s32 1, %s4
  %s7 = scalar_select 0, %s6, %s4
  $region1: #{tpu_custom_call.1} parent=0
    #allocation2 [shape = 'u8[8192]{0}', space=vmem, size = 0x2000, scoped, tag = 'input window, operand 0, single buffered']
    #allocation3 [shape = 's32[1]{0}', space=sflag, size = 0x4, scoped, tag = 'scoped memory for tpu_custom_call.1']
    #allocation4 [shape = 's32[1]{0}', space=sflag, size = 0x4, scoped, tag = 'scoped memory for tpu_custom_call.1']
    #allocation5 [shape = 'u8[16384]{0}', space=vmem, size = 0x4000, scoped, tag = 'input window, operand 1, single buffered']
    #allocation6 [shape = 's32[1]{0}', space=sflag, size = 0x4, scoped, tag = 'scoped memory for tpu_custom_call.1']
    #allocation7 [shape = 'u8[8192]{0}', space=vmem, size = 0x2000, scoped, tag = 'output window, operand 0, single buffered']
    %8 = vsyncpa [#allocation3], 0
    %9 = vsyncpa [#allocation6], 0
    %10 = vsyncpa [#allocation4], 0
    // Predicated region
    $region2: #{tpu_custom_call.1} parent=1 // pred_check
      _
    $region3: #{tpu_custom_call.1} parent=1 // pred_check_branch
      %12 = sbr.rel (0) target = $region5
    $region4: #{tpu_custom_call.1} parent=1 // pred_region
      %s14 = ssub.s32 256, 256
      %15 = vsyncadd [#allocation3], %s14
      %s16 = sshll.u32 [#allocation2], 4
      %s17 = int_to_ptr.vmem [resolvable:$true] %s16
      %22 = dma.hbm_to_vmem [thread:$0]  %s0, 256, %s17, [#allocation3], 128, 128, 8
    $region5: #{tpu_custom_call.1} parent=1 // pred_fallthru
      _
    // Predicated region
    $region6: #{tpu_custom_call.1} parent=1 // pred_check
      _
    $region7: #{tpu_custom_call.1} parent=1 // pred_check_branch
      %24 = sbr.rel (0) target = $region9
    $region8: #{tpu_custom_call.1} parent=1 // pred_region
      %s26 = ssub.s32 512, 512
      %27 = vsyncadd [#allocation6], %s26
      %s28 = sshll.u32 [#allocation5], 4
      %s29 = int_to_ptr.vmem [resolvable:$true] %s28
      %34 = dma.hbm_to_vmem [thread:$0]  %s1, 512, %s29, [#allocation6], 128, 128, 8
    $region9: #{tpu_custom_call.1} parent=1 // pred_fallthru
      _
    // Predicated region
    $region10: #{tpu_custom_call.1} parent=1 // pred_check
      _
    $region11: #{tpu_custom_call.1} parent=1 // pred_check_branch
      %36 = sbr.rel (0) target = $region13
    $region12: #{tpu_custom_call.1} parent=1 // pred_region
      _
    $region13: #{tpu_custom_call.1} parent=1 // pred_fallthru
      _
    // Predicated region
    $region14: #{tpu_custom_call.1} parent=1 // pred_check
      _
    $region15: #{tpu_custom_call.1} parent=1 // pred_check_branch
      %38 = sbr.rel (0) target = $region17
    $region16: #{tpu_custom_call.1} parent=1 // pred_region
      %39 = dma.done [#allocation3], 256
    $region17: #{tpu_custom_call.1} parent=1 // pred_fallthru
      _
    // Predicated region
    $region18: #{tpu_custom_call.1} parent=1 // pred_check
      _
    $region19: #{tpu_custom_call.1} parent=1 // pred_check_branch
      %41 = sbr.rel (0) target = $region21
    $region20: #{tpu_custom_call.1} parent=1 // pred_region
      %42 = dma.done [#allocation6], 512
    $region21: #{tpu_custom_call.1} parent=1 // pred_fallthru
      _
    %v43 = vld [vmem:[#allocation2] sm:$0xff]
    %v44 = vld [vmem:[#allocation2 + $0x8] sm:$0xff]
    %vm45 = vcmask 261120
    %v46 = vsel %vm45, %v43, 0.0
    %47 = vadd.xlane.f32.xlu0 %v46
    %v48 = vpop.xlane.xlu0 %47
    %v49 = vsel %vm45, %v44, 0.0
    %50 = vadd.xlane.f32.xlu0 %v49
    %v51 = vpop.xlane.xlu0 %50
    %v52 = vmul.f32 %v48, 0.03125
    %v53 = vmul.f32 %v51, 0.03125
    %v54 = vsub.f32 %v43, %v52
    %v55 = vsub.f32 %v44, %v53
    %v56 = vmul.f32 %v54, %v54
    %v57 = vmul.f32 %v55, %v55
    %v58 = vsel %vm45, %v56, 0.0
    %59 = vadd.xlane.f32.xlu0 %v58
    %v60 = vpop.xlane.xlu0 %59
    %v61 = vsel %vm45, %v57, 0.0
    %62 = vadd.xlane.f32.xlu0 %v61
    %v63 = vpop.xlane.xlu0 %62
    %v64 = vmul.f32 %v60, 0.032258064
    %v65 = vmul.f32 %v63, 0.032258064
    %v66 = vrsqrt.pop %v64
    %v67 = vmul.f32 %v64, %v66
    %vm68 = vcmp.eq.f32.partialorder %v64, inf
    %v69 = vsel %vm68, %v64, %v67
    %vm70 = vcmp.eq.f32.partialorder %v64, 0.0
    %v71 = vand.u32 %v64, 2147483648
    %v72 = vsel %vm70, %v71, %v69
    %v73 = vrsqrt.pop %v65
    %v74 = vmul.f32 %v65, %v73
    %vm75 = vcmp.eq.f32.partialorder %v65, inf
    %v76 = vsel %vm75, %v65, %v74
    %vm77 = vcmp.eq.f32.partialorder %v65, 0.0
    %v78 = vand.u32 %v65, 2147483648
    %v79 = vsel %vm77, %v78, %v76
    %v80 = vadd.f32 %v72, 1e-06
    %v81 = vadd.f32 %v79, 1e-06
    %v82 = vrcp.pop %v80
    %v83 = vmul.f32 1.0, %v82
    %v84 = vrcp.pop %v81
    %v85 = vmul.f32 1.0, %v84
    %v86 = vmul.f32 %v54, %v83
    %v87 = vmul.f32 %v55, %v85
    %v88 = vld [vmem:[#allocation5] sm:$0xff]
    %v89 = vld [vmem:[#allocation5 + $0x8] sm:$0xff]
    %v90 = vld [vmem:[#allocation5 + $0x10] sm:$0xff]
    %v91 = vld [vmem:[#allocation5 + $0x18] sm:$0xff]
    %v92 = vld [vmem:[%s2] sm:$0x1]
    %v94 = vlaneseq
    %v95 = vshrl.u32 %v94, 7
    %v96 = vsub.s32 0, %v95
    %v97 = vrot.slane %v92, %v96
    %v100 = vsel %vm45, %v86, 0
    %v103 = vsel %vm45, %v87, 0
    %105 = vmatprep.subr.mxu0 0.0
    %106 = vmatpush1.msra.mxu0 %v88
    %107 = vmatprep.subr.mxu0 0.0
    %108 = vmatpush1.msra.mxu0 %v89
    %109 = vmatprep.subr.mxu0 0.0
    %110 = vmatpush1.msra.mxu0 %v90
    %111 = vmatprep.subr.mxu0 0.0
    %112 = vmatpush1.msra.mxu0 %v91
    %113 = vmatprep.subr.mxu0 0.0
    %114 = vmatpush1.msra.mxu0 0.0
    %115 = vmatprep.subr.mxu0 0.0
    %116 = vmatpush1.msra.mxu0 0.0
    %117 = vmatprep.subr.mxu0 0.0
    %118 = vmatpush1.msra.mxu0 0.0
    %119 = vmatprep.subr.mxu0 0.0
    %120 = vmatpush1.msra.mxu0 0.0
    %121 = vmatprep.subr.mxu0 0.0
    %122 = vmatpush1.msra.mxu0 0.0
    %123 = vmatprep.subr.mxu0 0.0
    %124 = vmatpush1.msra.mxu0 0.0
    %125 = vmatprep.subr.mxu0 0.0
    %126 = vmatpush1.msra.mxu0 0.0
    %127 = vmatprep.subr.mxu0 0.0
    %128 = vmatpush1.msra.mxu0 0.0
    %129 = vmatprep.subr.mxu0 0.0
    %130 = vmatpush1.msra.mxu0 0.0
    %131 = vmatprep.subr.mxu0 0.0
    %132 = vmatpush1.msra.mxu0 0.0
    %133 = vmatprep.subr.mxu0 0.0
    %134 = vmatpush1.msra.mxu0 0.0
    %135 = vmatprep.subr.mxu0 0.0
    %136 = vmatpush1.msra.mxu0 0.0
    %137 = vmatprep.subr.mxu0 0.0
    %138 = vmatpush1.msra.mxu0 0.0
    %139 = vmatprep.subr.mxu0 0.0
    %140 = vmatpush1.msra.mxu0 0.0
    %141 = vmatprep.subr.mxu0 0.0
    %142 = vmatpush1.msra.mxu0 0.0
    %143 = vmatprep.subr.mxu0 0.0
    %144 = vmatpush1.msra.mxu0 0.0
    %145 = vmatprep.subr.mxu0 0.0
    %146 = vmatpush1.msra.mxu0 0.0
    %147 = vmatprep.subr.mxu0 0.0
    %148 = vmatpush1.msra.mxu0 0.0
    %149 = vmatprep.subr.mxu0 0.0
    %150 = vmatpush1.msra.mxu0 0.0
    %151 = vmatprep.subr.mxu0 0.0
    %152 = vmatpush1.msra.mxu0 0.0
    %153 = vmatprep.subr.mxu0 0.0
    %154 = vmatpush1.msra.mxu0 0.0
    %155 = vmatprep.subr.mxu0 0.0
    %156 = vmatpush1.msra.mxu0 0.0
    %157 = vmatprep.subr.mxu0 0.0
    %158 = vmatpush1.msra.mxu0 0.0
    %159 = vmatprep.subr.mxu0 0.0
    %160 = vmatpush1.msra.mxu0 0.0
    %161 = vmatprep.subr.mxu0 0.0
    %162 = vmatpush1.msra.mxu0 0.0
    %163 = vmatprep.subr.mxu0 0.0
    %164 = vmatpush1.msra.mxu0 0.0
    %165 = vmatprep.subr.mxu0 0.0
    %166 = vmatpush1.msra.mxu0 0.0
    %167 = vmatprep.subr.mxu0 0.0
    %168 = vmatpush1.msra.mxu0 0.0
    %169 = vmatprep.mubr.f32.mxu0 0.0
    %170 = vmatmul.mubr.f32.gmra.mrb[0].mxu0 %v100
    %v171 = vpop.f32.mrb[0].mxu0
    %v172 = vadd.f32 %v97, %v171
    %v173 = vpop.f32.mrb[0].mxu0
    %174 = vmatprep.mubr.f32.mxu0 0.0
    %175 = vmatmul.mubr.f32.gmra.mrb[0].mxu0 %v103
    %v176 = vpop.f32.mrb[0].mxu0
    %v177 = vadd.f32 %v97, %v176
    %v178 = vpop.f32.mrb[0].mxu0
    %179 = vdwg.mxu0
    %v180 = vadd.f32 %v43, %v172
    %v181 = vadd.f32 %v44, %v177
    %182 = vst.msk [vmem:[#allocation7] sm:$0xff] %vm45, %v180
    %183 = vst.msk [vmem:[#allocation7 + $0x8] sm:$0xff] %vm45, %v181
    // Predicated region
    $region22: #{tpu_custom_call.1} parent=1 // pred_check
      _
    $region23: #{tpu_custom_call.1} parent=1 // pred_check_branch
      %185 = sbr.rel (0) target = $region25
    $region24: #{tpu_custom_call.1} parent=1 // pred_region
      %s187 = ssub.s32 256, 256
      %188 = vsyncadd [#allocation4], %s187
      %s189 = sshll.u32 [#allocation7], 4
      %s190 = int_to_ptr.vmem [resolvable:$true] %s189
      %195 = dma.vmem_to_hbm [thread:$0]  %s190, 256, %s3, [#allocation4], 128, 128, 8
    $region25: #{tpu_custom_call.1} parent=1 // pred_fallthru
      _
    // Predicated region
    $region26: #{tpu_custom_call.1} parent=1 // pred_check
      _
    $region27: #{tpu_custom_call.1} parent=1 // pred_check_branch
      %197 = sbr.rel (0) target = $region29
    $region28: #{tpu_custom_call.1} parent=1 // pred_region
      %198 = dma.done [#allocation4], 256
    $region29: #{tpu_custom_call.1} parent=1 // pred_fallthru
      _
    %199 = vsyncpa [#allocation3], 1
    %200 = vsyncpa [#allocation6], 1
    %201 = vsyncpa [#allocation4], 1

// kernel: tpu_custom_call.1
$region0: #{tpu_custom_call.1}
  #allocation0 [shape = 'u32[]', space=smem, size = 0x4, offset = 0x4, fixed_abs, tag = 'smem constant byte address 0x4 - core index']
  #allocation1 [shape = 'u32[144,128]{1,0:T(1,128)}', space=vmem, size = 0x12000, scoped, tag = 'internal scratch']
  %s0 = inlined_call_operand.hbm [shape: f32[16,32], index: 0, kind: input, shape index: {}]
  %s1 = inlined_call_operand.hbm [shape: f32[32,32], index: 1, kind: input, shape index: {}]
  %s2 = inlined_call_operand.vmem [shape: f32[1,32], index: 2, kind: input, shape index: {}]
  %s3 = inlined_call_operand.hbm [shape: f32[16,32], index: 3, kind: output, shape index: {}]
  %s4 = sld [smem:[#allocation0]]
  $region30: #{tpu_custom_call.1} parent=0
    _
  %s6 = ssub.s32 1, %s4
  %s7 = scalar_select 0, %s6, %s4
  $region1: #{tpu_custom_call.1} parent=0
    #allocation2 [shape = 'u8[8192]{0}', space=vmem, size = 0x2000, scoped, tag = 'input window, operand 0, single buffered']
    #allocation3 [shape = 's32[1]{0}', space=sflag, size = 0x4, scoped, tag = 'scoped memory for tpu_custom_call.1']
    #allocation4 [shape = 's32[1]{0}', space=sflag, size = 0x4, scoped, tag = 'scoped memory for tpu_custom_call.1']
    #allocation5 [shape = 'u8[16384]{0}', space=vmem, size = 0x4000, scoped, tag = 'input window, operand 1, single buffered']
    #allocation6 [shape = 's32[1]{0}', space=sflag, size = 0x4, scoped, tag = 'scoped memory for tpu_custom_call.1']
    #allocation7 [shape = 'u8[8192]{0}', space=vmem, size = 0x2000, scoped, tag = 'output window, operand 0, single buffered']
    %8 = vsyncpa [#allocation3], 0
    %9 = vsyncpa [#allocation6], 0
    %10 = vsyncpa [#allocation4], 0
    // Predicated region
    $region2: #{tpu_custom_call.1} parent=1 // pred_check
      _
    $region3: #{tpu_custom_call.1} parent=1 // pred_check_branch
      %12 = sbr.rel (0) target = $region5
    $region4: #{tpu_custom_call.1} parent=1 // pred_region
      %s14 = ssub.s32 256, 256
      %15 = vsyncadd [#allocation3], %s14
      %s16 = sshll.u32 [#allocation2], 4
      %s17 = int_to_ptr.vmem [resolvable:$true] %s16
      %22 = dma.hbm_to_vmem [thread:$0]  %s0, 256, %s17, [#allocation3], 128, 128, 8
    $region5: #{tpu_custom_call.1} parent=1 // pred_fallthru
      _
    // Predicated region
    $region6: #{tpu_custom_call.1} parent=1 // pred_check
      _
    $region7: #{tpu_custom_call.1} parent=1 // pred_check_branch
      %24 = sbr.rel (0) target = $region9
    $region8: #{tpu_custom_call.1} parent=1 // pred_region
      %s26 = ssub.s32 512, 512
      %27 = vsyncadd [#allocation6], %s26
      %s28 = sshll.u32 [#allocation5], 4
      %s29 = int_to_ptr.vmem [resolvable:$true] %s28
      %34 = dma.hbm_to_vmem [thread:$0]  %s1, 512, %s29, [#allocation6], 128, 128, 8
    $region9: #{tpu_custom_call.1} parent=1 // pred_fallthru
      _
    // Predicated region
    $region10: #{tpu_custom_call.1} parent=1 // pred_check
      _
    $region11: #{tpu_custom_call.1} parent=1 // pred_check_branch
      %36 = sbr.rel (0) target = $region13
    $region12: #{tpu_custom_call.1} parent=1 // pred_region
      _
    $region13: #{tpu_custom_call.1} parent=1 // pred_fallthru
      _
    // Predicated region
    $region14: #{tpu_custom_call.1} parent=1 // pred_check
      _
    $region15: #{tpu_custom_call.1} parent=1 // pred_check_branch
      %38 = sbr.rel (0) target = $region17
    $region16: #{tpu_custom_call.1} parent=1 // pred_region
      %39 = dma.done [#allocation3], 256
    $region17: #{tpu_custom_call.1} parent=1 // pred_fallthru
      _
    // Predicated region
    $region18: #{tpu_custom_call.1} parent=1 // pred_check
      _
    $region19: #{tpu_custom_call.1} parent=1 // pred_check_branch
      %41 = sbr.rel (0) target = $region21
    $region20: #{tpu_custom_call.1} parent=1 // pred_region
      %42 = dma.done [#allocation6], 512
    $region21: #{tpu_custom_call.1} parent=1 // pred_fallthru
      _
    %v43 = vld [vmem:[#allocation2] sm:$0xff]
    %v44 = vld [vmem:[#allocation2 + $0x8] sm:$0xff]
    %vm45 = vcmask 261120
    %v46 = vsel %vm45, %v43, 0.0
    %47 = vadd.xlane.f32.xlu0 %v46
    %v48 = vpop.xlane.xlu0 %47
    %v49 = vsel %vm45, %v44, 0.0
    %50 = vadd.xlane.f32.xlu0 %v49
    %v51 = vpop.xlane.xlu0 %50
    %v52 = vmul.f32 %v48, 0.03125
    %v53 = vmul.f32 %v51, 0.03125
    %v54 = vsub.f32 %v43, %v52
    %v55 = vsub.f32 %v44, %v53
    %v56 = vmul.f32 %v54, %v54
    %v57 = vmul.f32 %v55, %v55
    %v58 = vsel %vm45, %v56, 0.0
    %59 = vadd.xlane.f32.xlu0 %v58
    %v60 = vpop.xlane.xlu0 %59
    %v61 = vsel %vm45, %v57, 0.0
    %62 = vadd.xlane.f32.xlu0 %v61
    %v63 = vpop.xlane.xlu0 %62
    %v64 = vmul.f32 %v60, 0.032258064
    %v65 = vmul.f32 %v63, 0.032258064
    %v66 = vrsqrt.pop %v64
    %v67 = vmul.f32 %v64, %v66
    %vm68 = vcmp.eq.f32.partialorder %v64, inf
    %v69 = vsel %vm68, %v64, %v67
    %vm70 = vcmp.eq.f32.partialorder %v64, 0.0
    %v71 = vand.u32 %v64, 2147483648
    %v72 = vsel %vm70, %v71, %v69
    %v73 = vrsqrt.pop %v65
    %v74 = vmul.f32 %v65, %v73
    %vm75 = vcmp.eq.f32.partialorder %v65, inf
    %v76 = vsel %vm75, %v65, %v74
    %vm77 = vcmp.eq.f32.partialorder %v65, 0.0
    %v78 = vand.u32 %v65, 2147483648
    %v79 = vsel %vm77, %v78, %v76
    %v80 = vadd.f32 %v72, 1e-06
    %v81 = vadd.f32 %v79, 1e-06
    %v82 = vrcp.pop %v80
    %v83 = vmul.f32 1.0, %v82
    %v84 = vrcp.pop %v81
    %v85 = vmul.f32 1.0, %v84
    %v86 = vmul.f32 %v54, %v83
    %v87 = vmul.f32 %v55, %v85
    %v88 = vld [vmem:[#allocation5] sm:$0xff]
    %v89 = vld [vmem:[#allocation5 + $0x8] sm:$0xff]
    %v90 = vld [vmem:[#allocation5 + $0x10] sm:$0xff]
    %v91 = vld [vmem:[#allocation5 + $0x18] sm:$0xff]
    %v92 = vld [vmem:[%s2] sm:$0x1]
    %v94 = vlaneseq
    %v95 = vshrl.u32 %v94, 7
    %v96 = vsub.s32 0, %v95
    %v97 = vrot.slane %v92, %v96
    %v100 = vsel %vm45, %v86, 0
    %v103 = vsel %vm45, %v87, 0
    %105 = vmatprep.subr.mxu0 0.0
    %106 = vmatpush1.msra.mxu0 %v88
    %107 = vmatprep.subr.mxu0 0.0
    %108 = vmatpush1.msra.mxu0 %v89
    %109 = vmatprep.subr.mxu0 0.0
    %110 = vmatpush1.msra.mxu0 %v90
    %111 = vmatprep.subr.mxu0 0.0
    %112 = vmatpush1.msra.mxu0 %v91
    %113 = vmatprep.subr.mxu0 0.0
    %114 = vmatpush1.msra.mxu0 0.0
    %115 = vmatprep.subr.mxu0 0.0
    %116 = vmatpush1.msra.mxu0 0.0
    %117 = vmatprep.subr.mxu0 0.0
    %118 = vmatpush1.msra.mxu0 0.0
    %119 = vmatprep.subr.mxu0 0.0
    %120 = vmatpush1.msra.mxu0 0.0
    %121 = vmatprep.subr.mxu0 0.0
    %122 = vmatpush1.msra.mxu0 0.0
    %123 = vmatprep.subr.mxu0 0.0
    %124 = vmatpush1.msra.mxu0 0.0
    %125 = vmatprep.subr.mxu0 0.0
    %126 = vmatpush1.msra.mxu0 0.0
    %127 = vmatprep.subr.mxu0 0.0
    %128 = vmatpush1.msra.mxu0 0.0
    %129 = vmatprep.subr.mxu0 0.0
    %130 = vmatpush1.msra.mxu0 0.0
    %131 = vmatprep.subr.mxu0 0.0
    %132 = vmatpush1.msra.mxu0 0.0
    %133 = vmatprep.subr.mxu0 0.0
    %134 = vmatpush1.msra.mxu0 0.0
    %135 = vmatprep.subr.mxu0 0.0
    %136 = vmatpush1.msra.mxu0 0.0
    %137 = vmatprep.subr.mxu0 0.0
    %138 = vmatpush1.msra.mxu0 0.0
    %139 = vmatprep.subr.mxu0 0.0
    %140 = vmatpush1.msra.mxu0 0.0
    %141 = vmatprep.subr.mxu0 0.0
    %142 = vmatpush1.msra.mxu0 0.0
    %143 = vmatprep.subr.mxu0 0.0
    %144 = vmatpush1.msra.mxu0 0.0
    %145 = vmatprep.subr.mxu0 0.0
    %146 = vmatpush1.msra.mxu0 0.0
    %147 = vmatprep.subr.mxu0 0.0
    %148 = vmatpush1.msra.mxu0 0.0
    %149 = vmatprep.subr.mxu0 0.0
    %150 = vmatpush1.msra.mxu0 0.0
    %151 = vmatprep.subr.mxu0 0.0
    %152 = vmatpush1.msra.mxu0 0.0
    %153 = vmatprep.subr.mxu0 0.0
    %154 = vmatpush1.msra.mxu0 0.0
    %155 = vmatprep.subr.mxu0 0.0
    %156 = vmatpush1.msra.mxu0 0.0
    %157 = vmatprep.subr.mxu0 0.0
    %158 = vmatpush1.msra.mxu0 0.0
    %159 = vmatprep.subr.mxu0 0.0
    %160 = vmatpush1.msra.mxu0 0.0
    %161 = vmatprep.subr.mxu0 0.0
    %162 = vmatpush1.msra.mxu0 0.0
    %163 = vmatprep.subr.mxu0 0.0
    %164 = vmatpush1.msra.mxu0 0.0
    %165 = vmatprep.subr.mxu0 0.0
    %166 = vmatpush1.msra.mxu0 0.0
    %167 = vmatprep.subr.mxu0 0.0
    %168 = vmatpush1.msra.mxu0 0.0
    %169 = vmatprep.mubr.f32.mxu0 0.0
    %170 = vmatmul.mubr.f32.gmra.mrb[0].mxu0 %v100
    %v171 = vpop.f32.mrb[0].mxu0
    %v172 = vadd.f32 %v97, %v171
    %v173 = vpop.f32.mrb[0].mxu0
    %174 = vmatprep.mubr.f32.mxu0 0.0
    %175 = vmatmul.mubr.f32.gmra.mrb[0].mxu0 %v103
    %v176 = vpop.f32.mrb[0].mxu0
    %v177 = vadd.f32 %v97, %v176
    %v178 = vpop.f32.mrb[0].mxu0
    %179 = vdwg.mxu0
    %v180 = vadd.f32 %v43, %v172
    %v181 = vadd.f32 %v44, %v177
    %182 = vst.msk [vmem:[#allocation7] sm:$0xff] %vm45, %v180
    %183 = vst.msk [vmem:[#allocation7 + $0x8] sm:$0xff] %vm45, %v181
    // Predicated region
    $region22: #{tpu_custom_call.1} parent=1 // pred_check
      _
    $region23: #{tpu_custom_call.1} parent=1 // pred_check_branch
      %185 = sbr.rel (0) target = $region25
    $region24: #{tpu_custom_call.1} parent=1 // pred_region
      %s187 = ssub.s32 256, 256
      %188 = vsyncadd [#allocation4], %s187
      %s189 = sshll.u32 [#allocation7], 4
      %s190 = int_to_ptr.vmem [resolvable:$true] %s189
      %195 = dma.vmem_to_hbm [thread:$0]  %s190, 256, %s3, [#allocation4], 128, 128, 8
    $region25: #{tpu_custom_call.1} parent=1 // pred_fallthru
      _
    // Predicated region
    $region26: #{tpu_custom_call.1} parent=1 // pred_check
      _
    $region27: #{tpu_custom_call.1} parent=1 // pred_check_branch
      %197 = sbr.rel (0) target = $region29
    $region28: #{tpu_custom_call.1} parent=1 // pred_region
      %198 = dma.done [#allocation4], 256
    $region29: #{tpu_custom_call.1} parent=1 // pred_fallthru
      _
    %199 = vsyncpa [#allocation3], 1
    %200 = vsyncpa [#allocation6], 1
    %201 = vsyncpa [#allocation4], 1

</llo_original>
